<compile_context>
chip_gen: v7x
topology: tpu7x:2x2x1
jax: 0.10.0
libtpu: 0.0.40
codegen_flags: <defaults>
</compile_context>

<pallas_src>
import functools

import jax
import jax.numpy as jnp
from jax.experimental import pallas as pl
from jax.experimental.pallas import tpu as pltpu


# Keep total live block VMEM well under v7x's 64 MiB physical VMEM per TC
# (also comfortably inside v5e/v6e).  Blocks are budgeted at 36 MiB and the
# scoped limit is raised/capped explicitly at 48 MiB.
_VMEM_LIMIT_BYTES = 48 * 1024 * 1024
_DEFAULT_BLOCK_BUDGET_BYTES = 36 * 1024 * 1024


def _round_up(x, m):
    return ((x + m - 1) // m) * m


# ---------------------------------------------------------------------------
# In-kernel helpers
# ---------------------------------------------------------------------------
def _se_gate_from_mean(mean_col, w1t, b1_row, w2, b2_col):
    """Tiny SE gate MLP, all in (C, .) column layout (no transposes).

    mean_col: (C, 1)   w1t: (C, Cm)   b1_row: (1, Cm)
    w2:       (C, Cm)  b2_col: (C, 1)
    returns gate: (C, 1)
    """
    hid = jnp.sum(w1t * mean_col, axis=0, keepdims=True) + b1_row     # (1, Cm)
    hid = jnp.maximum(hid, 0.0)                                       # ReLU
    logit = jnp.sum(w2 * hid, axis=1, keepdims=True) + b2_col         # (C, 1)
    return 1.0 / (1.0 + jnp.exp(-logit))                              # sigmoid


# ---------------------------------------------------------------------------
# Fused single-pass kernel (one batch element per grid step)
# ---------------------------------------------------------------------------
def _concat_se_fused_kernel(x1_ref, x2_ref, w1t_ref, b1_ref, w2_ref, b2_ref,
                            o_ref, *, inv_hw):
    x1 = x1_ref[0].astype(jnp.float32)                                # (C, HW)
    x2 = x2_ref[0].astype(jnp.float32)                                # (C, HW)

    mean1 = jnp.sum(x1, axis=-1, keepdims=True) * inv_hw              # (C, 1)
    mean2 = jnp.sum(x2, axis=-1, keepdims=True) * inv_hw              # (C, 1)

    g1 = _se_gate_from_mean(mean1, w1t_ref[0], b1_ref[0], w2_ref[0], b2_ref[0])
    g2 = _se_gate_from_mean(mean2, w1t_ref[1], b1_ref[1], w2_ref[1], b2_ref[1])

    o_ref[0] = (x1 * g1 + x2 * g2).astype(o_ref.dtype)


def _concat_block2_fused(x1, x2, packed, inv_hw):
    n, c, hw = x1.shape
    w1t, b1, w2, b2 = packed
    cm = w1t.shape[-1]

    kernel = functools.partial(_concat_se_fused_kernel, inv_hw=inv_hw)
    return pl.pallas_call(
        kernel,
        out_shape=jax.ShapeDtypeStruct((n, c, hw), x1.dtype),
        grid_spec=pltpu.PrefetchScalarGridSpec(
            num_scalar_prefetch=0,
            grid=(n,),
            in_specs=[
                pl.BlockSpec((1, c, hw), lambda i: (i, 0, 0)),
                pl.BlockSpec((1, c, hw), lambda i: (i, 0, 0)),
                pl.BlockSpec((2, c, cm), lambda i: (0, 0, 0)),
                pl.BlockSpec((2, 1, cm), lambda i: (0, 0, 0)),
                pl.BlockSpec((2, c, cm), lambda i: (0, 0, 0)),
                pl.BlockSpec((2, c, 1), lambda i: (0, 0, 0)),
            ],
            out_specs=pl.BlockSpec((1, c, hw), lambda i: (i, 0, 0)),
        ),
        compiler_params=pltpu.CompilerParams(
            dimension_semantics=("parallel",),
            vmem_limit_bytes=_VMEM_LIMIT_BYTES),
    )(x1, x2, w1t, b1, w2, b2)


# ---------------------------------------------------------------------------
# Two-pass path for shapes whose (C, H*W) slab does not fit the VMEM budget
# ---------------------------------------------------------------------------
def _se_pool_kernel(x1_ref, x2_ref, w1t_ref, b1_ref, w2_ref, b2_ref,
                    wt1_ref, wt2_ref, acc1, acc2, *, inv_hw):
    k = pl.program_id(1)

    @pl.when(k == 0)
    def _():
        acc1[...] = jnp.zeros_like(acc1)
        acc2[...] = jnp.zeros_like(acc2)

    acc1[...] += jnp.sum(x1_ref[0].astype(jnp.float32), axis=-1, keepdims=True)
    acc2[...] += jnp.sum(x2_ref[0].astype(jnp.float32), axis=-1, keepdims=True)

    @pl.when(k == pl.num_programs(1) - 1)
    def _():
        wt1_ref[0] = _se_gate_from_mean(acc1[...] * inv_hw, w1t_ref[0],
                                        b1_ref[0], w2_ref[0], b2_ref[0])
        wt2_ref[0] = _se_gate_from_mean(acc2[...] * inv_hw, w1t_ref[1],
                                        b1_ref[1], w2_ref[1], b2_ref[1])


def _se_apply_kernel(x1_ref, x2_ref, wt1_ref, wt2_ref, o_ref):
    y = (x1_ref[0].astype(jnp.float32) * wt1_ref[0]
         + x2_ref[0].astype(jnp.float32) * wt2_ref[0])
    o_ref[0] = y.astype(o_ref.dtype)


def _concat_block2_two_pass(x1, x2, packed, inv_hw, block_budget_bytes):
    n, c, hw = x1.shape
    w1t, b1, w2, b2 = packed
    cm = w1t.shape[-1]

    # Apply kernel double-buffers 3 (c, hw_tile) slabs -> 6 live blocks.
    itemsize = max(jnp.dtype(x1.dtype).itemsize, 4)
    max_lanes = max(128, ((block_budget_bytes // (6 * c * itemsize)) // 128) * 128)
    hw_tile = min(_round_up(hw, 128), max_lanes)
    hw_pad = _round_up(hw, hw_tile)
    kt = hw_pad // hw_tile

    if hw_pad != hw:
        pad = ((0, 0), (0, 0), (0, hw_pad - hw))
        x1p = jnp.pad(x1, pad)   # zero padding does not change the pooled sum
        x2p = jnp.pad(x2, pad)
    else:
        x1p, x2p = x1, x2

    pool_kernel = functools.partial(_se_pool_kernel, inv_hw=inv_hw)
    wt1, wt2 = pl.pallas_call(
        pool_kernel,
        out_shape=(jax.ShapeDtypeStruct((n, c, 1), jnp.float32),
                   jax.ShapeDtypeStruct((n, c, 1), jnp.float32)),
        grid_spec=pltpu.PrefetchScalarGridSpec(
            num_scalar_prefetch=0,
            grid=(n, kt),
            in_specs=[
                pl.BlockSpec((1, c, hw_tile), lambda i, k: (i, 0, k)),
                pl.BlockSpec((1, c, hw_tile), lambda i, k: (i, 0, k)),
                pl.BlockSpec((2, c, cm), lambda i, k: (0, 0, 0)),
                pl.BlockSpec((2, 1, cm), lambda i, k: (0, 0, 0)),
                pl.BlockSpec((2, c, cm), lambda i, k: (0, 0, 0)),
                pl.BlockSpec((2, c, 1), lambda i, k: (0, 0, 0)),
            ],
            out_specs=[
                pl.BlockSpec((1, c, 1), lambda i, k: (i, 0, 0)),
                pl.BlockSpec((1, c, 1), lambda i, k: (i, 0, 0)),
            ],
            scratch_shapes=[pltpu.VMEM((c, 1), jnp.float32),
                            pltpu.VMEM((c, 1), jnp.float32)],
        ),
        compiler_params=pltpu.CompilerParams(
            dimension_semantics=("parallel", "arbitrary"),
            vmem_limit_bytes=_VMEM_LIMIT_BYTES),
    )(x1p, x2p, w1t, b1, w2, b2)

    out = pl.pallas_call(
        _se_apply_kernel,
        out_shape=jax.ShapeDtypeStruct((n, c, hw_pad), x1.dtype),
        grid_spec=pltpu.PrefetchScalarGridSpec(
            num_scalar_prefetch=0,
            grid=(n, kt),
            in_specs=[
                pl.BlockSpec((1, c, hw_tile), lambda i, k: (i, 0, k)),
                pl.BlockSpec((1, c, hw_tile), lambda i, k: (i, 0, k)),
                pl.BlockSpec((1, c, 1), lambda i, k: (i, 0, 0)),
                pl.BlockSpec((1, c, 1), lambda i, k: (i, 0, 0)),
            ],
            out_specs=pl.BlockSpec((1, c, hw_tile), lambda i, k: (i, 0, k)),
        ),
        compiler_params=pltpu.CompilerParams(
            dimension_semantics=("parallel", "parallel"),
            vmem_limit_bytes=_VMEM_LIMIT_BYTES),
    )(x1p, x2p, wt1, wt2)

    return out[:, :, :hw] if hw_pad != hw else out


# ---------------------------------------------------------------------------
# Module wrapper
# ---------------------------------------------------------------------------
def concat_block2_forward(se1, se2, packed,
                          block_budget_bytes=_DEFAULT_BLOCK_BUDGET_BYTES):
    assert se1.shape == se2.shape and se1.dtype == se2.dtype
    n, c, h, w = se1.shape
    hw = h * w
    x1 = se1.reshape(n, c, hw)          # free reshape, no transpose
    x2 = se2.reshape(n, c, hw)
    inv_hw = 1.0 / float(hw)

    itemsize = max(jnp.dtype(se1.dtype).itemsize, 4)
    fused_bytes = 6 * c * hw * itemsize   # 2 inputs + 1 output, double-buffered
    if fused_bytes <= block_budget_bytes:
        y = _concat_block2_fused(x1, x2, packed, inv_hw)
    else:
        y = _concat_block2_two_pass(x1, x2, packed, inv_hw, block_budget_bytes)
    return y.reshape(n, c, h, w)


def _init_se_params(key, c, cm):
    k1, k2, k3, k4 = jax.random.split(key, 4)
    w1 = jax.random.normal(k1, (cm, c), jnp.float32) * (1.0 / (c ** 0.5))
    b1 = jax.random.normal(k2, (cm,), jnp.float32) * 0.1
    w2 = jax.random.normal(k3, (c, cm), jnp.float32) * (1.0 / (cm ** 0.5))
    b2 = jax.random.normal(k4, (c,), jnp.float32) * 0.1
    return w1, b1, w2, b2


def _pack_params(p_a, p_b):
    (w1a, b1a, w2a, b2a), (w1b, b1b, w2b, b2b) = p_a, p_b
    w1t = jnp.stack([w1a.T, w1b.T])                                   # (2, C, Cm)
    b1 = jnp.stack([b1a.reshape(1, -1), b1b.reshape(1, -1)])          # (2, 1, Cm)
    w2 = jnp.stack([w2a, w2b])                                        # (2, C, Cm)
    b2 = jnp.stack([b2a.reshape(-1, 1), b2b.reshape(-1, 1)])          # (2, C, 1)
    return w1t, b1, w2, b2


class ConcatBlock2:
    """JAX/Pallas port of the PyTorch ConcatBlock2 (2x SqueezeAndExcitation + add)."""

    def __init__(self, channels_in, reduction=8, key=None):
        if key is None:
            key = jax.random.PRNGKey(0)
        cm = channels_in // reduction
        assert cm >= 1, "channels_in must be >= reduction"
        k1, k2 = jax.random.split(key)
        self.p1 = _init_se_params(k1, channels_in, cm)   # se_1 params
        self.p2 = _init_se_params(k2, channels_in, cm)   # se_2 params
        self.packed = _pack_params(self.p1, self.p2)

    def __call__(self, se1, se2,
                 block_budget_bytes=_DEFAULT_BLOCK_BUDGET_BYTES):
        return concat_block2_forward(se1, se2, self.packed,
                                     block_budget_bytes=block_budget_bytes)


# ---------------------------------------------------------------------------
# Plain-JAX reference + self-test
# ---------------------------------------------------------------------------
def _ref_se(x, w1, b1, w2, b2):
    pooled = jnp.mean(x, axis=(2, 3))                       # adaptive_avg_pool2d(x, 1)
    hid = jnp.maximum(pooled @ w1.T + b1, 0.0)              # conv1x1 + ReLU
    gate = jax.nn.sigmoid(hid @ w2.T + b2)                  # conv1x1 + Sigmoid
    return x * gate[:, :, None, None]


if __name__ == "__main__":
    key = jax.random.PRNGKey(0)
    kx1, kx2, kp = jax.random.split(key, 3)

    N, C, H, W = 2, 32, 16, 16        # reduction=8 -> hidden gate width 4
    block = ConcatBlock2(C, reduction=8, key=kp)

    se1 = jax.random.normal(kx1, (N, C, H, W), dtype=jnp.float32)
    se2 = jax.random.normal(kx2, (N, C, H, W), dtype=jnp.float32)

    # Fused single-pass path (default: slabs fit the VMEM budget).
    y_fused = jax.block_until_ready(block(se1, se2))
    # Force the tiled two-pass path too (tiny budget) so both kernels are exercised.
    y_tiled = jax.block_until_ready(block(se1, se2, block_budget_bytes=128 * 1024))

    y_ref = _ref_se(se1, *block.p1) + _ref_se(se2, *block.p2)

    assert y_fused.shape == se1.shape and y_tiled.shape == se1.shape
    assert jnp.allclose(y_fused, y_ref, atol=1e-5, rtol=1e-5)
    assert jnp.allclose(y_tiled, y_ref, atol=1e-5, rtol=1e-5)

    print("KERNEL_OK")
</pallas_src>

<mosaic_0001>
module attributes {stable_mosaic.version = 11 : i64} {
  func.func @_concat_se_fused_kernel(%arg0: i32, %arg1: memref<1x32x256xf32, #tpu.memory_space<vmem>>, %arg2: memref<1x32x256xf32, #tpu.memory_space<vmem>>, %arg3: memref<2x32x4xf32, #tpu.memory_space<vmem>>, %arg4: memref<2x1x4xf32, #tpu.memory_space<vmem>>, %arg5: memref<2x32x4xf32, #tpu.memory_space<vmem>>, %arg6: memref<2x32x1xf32, #tpu.memory_space<vmem>>, %arg7: memref<1x32x256xf32, #tpu.memory_space<vmem>>) attributes {dimension_semantics = [#tpu.dimension_semantics<parallel>], iteration_bounds = array<i64: 2>, scalar_prefetch = 0 : i64, scratch_operands = 0 : i64, tpu.core_type = #tpu.core_type<tc>, window_params = [{transform_indices = @transform_0, window_bounds = array<i64: 1, 32, 256>}, {transform_indices = @transform_1, window_bounds = array<i64: 1, 32, 256>}, {pipeline_mode = #tpu.pipeline_mode<synchronous>, transform_indices = @transform_2, window_bounds = array<i64: 2, 32, 4>}, {pipeline_mode = #tpu.pipeline_mode<synchronous>, transform_indices = @transform_3, window_bounds = array<i64: 2, 1, 4>}, {pipeline_mode = #tpu.pipeline_mode<synchronous>, transform_indices = @transform_4, window_bounds = array<i64: 2, 32, 4>}, {pipeline_mode = #tpu.pipeline_mode<synchronous>, transform_indices = @transform_5, window_bounds = array<i64: 2, 32, 1>}, {transform_indices = @transform_6, window_bounds = array<i64: 1, 32, 256>}]} {
    %c0 = arith.constant 0 : index
    %c0_0 = arith.constant 0 : index
    %c0_1 = arith.constant 0 : index
    %0 = vector.load %arg1[%c0, %c0_0, %c0_1] : memref<1x32x256xf32, #tpu.memory_space<vmem>>, vector<1x32x256xf32>
    %1 = vector.shape_cast %0 : vector<1x32x256xf32> to vector<32x256xf32>
    %c0_2 = arith.constant 0 : index
    %c0_3 = arith.constant 0 : index
    %c0_4 = arith.constant 0 : index
    %2 = vector.load %arg2[%c0_2, %c0_3, %c0_4] : memref<1x32x256xf32, #tpu.memory_space<vmem>>, vector<1x32x256xf32>
    %3 = vector.shape_cast %2 : vector<1x32x256xf32> to vector<32x256xf32>
    %cst = arith.constant dense<0.000000e+00> : vector<32xf32>
    %4 = vector.multi_reduction <add>, %1, %cst [1] : vector<32x256xf32> to vector<32xf32>
    %5 = vector.shape_cast %4 : vector<32xf32> to vector<32x1xf32>
    %cst_5 = arith.constant 3.906250e-03 : f32
    %6 = vector.broadcast %cst_5 : f32 to vector<32x1xf32>
    %7 = arith.mulf %5, %6 : vector<32x1xf32>
    %cst_6 = arith.constant dense<0.000000e+00> : vector<32xf32>
    %8 = vector.multi_reduction <add>, %3, %cst_6 [1] : vector<32x256xf32> to vector<32xf32>
    %9 = vector.shape_cast %8 : vector<32xf32> to vector<32x1xf32>
    %cst_7 = arith.constant 3.906250e-03 : f32
    %10 = vector.broadcast %cst_7 : f32 to vector<32x1xf32>
    %11 = arith.mulf %9, %10 : vector<32x1xf32>
    %c0_8 = arith.constant 0 : index
    %c0_9 = arith.constant 0 : index
    %c0_10 = arith.constant 0 : index
    %12 = vector.load %arg3[%c0_8, %c0_9, %c0_10] : memref<2x32x4xf32, #tpu.memory_space<vmem>>, vector<1x32x4xf32>
    %13 = vector.shape_cast %12 : vector<1x32x4xf32> to vector<32x4xf32>
    %c0_11 = arith.constant 0 : index
    %c0_12 = arith.constant 0 : index
    %c0_13 = arith.constant 0 : index
    %14 = vector.load %arg4[%c0_11, %c0_12, %c0_13] : memref<2x1x4xf32, #tpu.memory_space<vmem>>, vector<1x1x4xf32>
    %15 = vector.shape_cast %14 : vector<1x1x4xf32> to vector<1x4xf32>
    %c0_14 = arith.constant 0 : index
    %c0_15 = arith.constant 0 : index
    %c0_16 = arith.constant 0 : index
    %16 = vector.load %arg5[%c0_14, %c0_15, %c0_16] : memref<2x32x4xf32, #tpu.memory_space<vmem>>, vector<1x32x4xf32>
    %17 = vector.shape_cast %16 : vector<1x32x4xf32> to vector<32x4xf32>
    %c0_17 = arith.constant 0 : index
    %c0_18 = arith.constant 0 : index
    %c0_19 = arith.constant 0 : index
    %18 = vector.load %arg6[%c0_17, %c0_18, %c0_19] : memref<2x32x1xf32, #tpu.memory_space<vmem>>, vector<1x32x1xf32>
    %19 = vector.shape_cast %18 : vector<1x32x1xf32> to vector<32x1xf32>
    %20 = vector.broadcast %7 : vector<32x1xf32> to vector<32x4xf32>
    %21 = arith.mulf %13, %20 : vector<32x4xf32>
    %cst_20 = arith.constant dense<0.000000e+00> : vector<4xf32>
    %22 = vector.multi_reduction <add>, %21, %cst_20 [0] : vector<32x4xf32> to vector<4xf32>
    %23 = vector.shape_cast %22 : vector<4xf32> to vector<1x4xf32>
    %24 = arith.addf %23, %15 : vector<1x4xf32>
    %cst_21 = arith.constant 0.000000e+00 : f32
    %25 = vector.broadcast %cst_21 : f32 to vector<1x4xf32>
    %26 = arith.maximumf %24, %25 : vector<1x4xf32>
    %27 = vector.broadcast %26 : vector<1x4xf32> to vector<32x4xf32>
    %28 = arith.mulf %17, %27 : vector<32x4xf32>
    %cst_22 = arith.constant dense<0.000000e+00> : vector<32xf32>
    %29 = vector.multi_reduction <add>, %28, %cst_22 [1] : vector<32x4xf32> to vector<32xf32>
    %30 = vector.shape_cast %29 : vector<32xf32> to vector<32x1xf32>
    %31 = arith.addf %30, %19 : vector<32x1xf32>
    %cst_23 = arith.constant 0.000000e+00 : f32
    %32 = vector.broadcast %cst_23 : f32 to vector<32x1xf32>
    %33 = arith.subf %32, %31 : vector<32x1xf32>
    %34 = math.exp %33 : vector<32x1xf32>
    %cst_24 = arith.constant 1.000000e+00 : f32
    %35 = vector.broadcast %cst_24 : f32 to vector<32x1xf32>
    %36 = arith.addf %35, %34 : vector<32x1xf32>
    %cst_25 = arith.constant 1.000000e+00 : f32
    %37 = vector.broadcast %cst_25 : f32 to vector<32x1xf32>
    %38 = arith.divf %37, %36 : vector<32x1xf32>
    %c1 = arith.constant 1 : index
    %c0_26 = arith.constant 0 : index
    %c0_27 = arith.constant 0 : index
    %39 = vector.load %arg3[%c1, %c0_26, %c0_27] : memref<2x32x4xf32, #tpu.memory_space<vmem>>, vector<1x32x4xf32>
    %40 = vector.shape_cast %39 : vector<1x32x4xf32> to vector<32x4xf32>
    %c1_28 = arith.constant 1 : index
    %c0_29 = arith.constant 0 : index
    %c0_30 = arith.constant 0 : index
    %41 = vector.load %arg4[%c1_28, %c0_29, %c0_30] : memref<2x1x4xf32, #tpu.memory_space<vmem>>, vector<1x1x4xf32>
    %42 = vector.shape_cast %41 : vector<1x1x4xf32> to vector<1x4xf32>
    %c1_31 = arith.constant 1 : index
    %c0_32 = arith.constant 0 : index
    %c0_33 = arith.constant 0 : index
    %43 = vector.load %arg5[%c1_31, %c0_32, %c0_33] : memref<2x32x4xf32, #tpu.memory_space<vmem>>, vector<1x32x4xf32>
    %44 = vector.shape_cast %43 : vector<1x32x4xf32> to vector<32x4xf32>
    %c1_34 = arith.constant 1 : index
    %c0_35 = arith.constant 0 : index
    %c0_36 = arith.constant 0 : index
    %45 = vector.load %arg6[%c1_34, %c0_35, %c0_36] : memref<2x32x1xf32, #tpu.memory_space<vmem>>, vector<1x32x1xf32>
    %46 = vector.shape_cast %45 : vector<1x32x1xf32> to vector<32x1xf32>
    %47 = vector.broadcast %11 : vector<32x1xf32> to vector<32x4xf32>
    %48 = arith.mulf %40, %47 : vector<32x4xf32>
    %cst_37 = arith.constant dense<0.000000e+00> : vector<4xf32>
    %49 = vector.multi_reduction <add>, %48, %cst_37 [0] : vector<32x4xf32> to vector<4xf32>
    %50 = vector.shape_cast %49 : vector<4xf32> to vector<1x4xf32>
    %51 = arith.addf %50, %42 : vector<1x4xf32>
    %cst_38 = arith.constant 0.000000e+00 : f32
    %52 = vector.broadcast %cst_38 : f32 to vector<1x4xf32>
    %53 = arith.maximumf %51, %52 : vector<1x4xf32>
    %54 = vector.broadcast %53 : vector<1x4xf32> to vector<32x4xf32>
    %55 = arith.mulf %44, %54 : vector<32x4xf32>
    %cst_39 = arith.constant dense<0.000000e+00> : vector<32xf32>
    %56 = vector.multi_reduction <add>, %55, %cst_39 [1] : vector<32x4xf32> to vector<32xf32>
    %57 = vector.shape_cast %56 : vector<32xf32> to vector<32x1xf32>
    %58 = arith.addf %57, %46 : vector<32x1xf32>
    %cst_40 = arith.constant 0.000000e+00 : f32
    %59 = vector.broadcast %cst_40 : f32 to vector<32x1xf32>
    %60 = arith.subf %59, %58 : vector<32x1xf32>
    %61 = math.exp %60 : vector<32x1xf32>
    %cst_41 = arith.constant 1.000000e+00 : f32
    %62 = vector.broadcast %cst_41 : f32 to vector<32x1xf32>
    %63 = arith.addf %62, %61 : vector<32x1xf32>
    %cst_42 = arith.constant 1.000000e+00 : f32
    %64 = vector.broadcast %cst_42 : f32 to vector<32x1xf32>
    %65 = arith.divf %64, %63 : vector<32x1xf32>
    %66 = vector.broadcast %38 : vector<32x1xf32> to vector<32x256xf32>
    %67 = arith.mulf %1, %66 : vector<32x256xf32>
    %68 = vector.broadcast %65 : vector<32x1xf32> to vector<32x256xf32>
    %69 = arith.mulf %3, %68 : vector<32x256xf32>
    %70 = arith.addf %67, %69 : vector<32x256xf32>
    %c0_43 = arith.constant 0 : index
    %c0_44 = arith.constant 0 : index
    %c0_45 = arith.constant 0 : index
    %71 = vector.load %arg7[%c0_43, %c0_44, %c0_45] : memref<1x32x256xf32, #tpu.memory_space<vmem>>, vector<1x32x256xf32>
    %72 = vector.shape_cast %71 : vector<1x32x256xf32> to vector<32x256xf32>
    %73 = vector.shape_cast %70 : vector<32x256xf32> to vector<1x32x256xf32>
    tpu.vector_store %arg7[%c0_43, %c0_44, %c0_45], %73 {strides = array<i32>} : memref<1x32x256xf32, #tpu.memory_space<vmem>>, vector<1x32x256xf32>,
    return
  }
  func.func @transform_0(%arg0: i32) -> (i32, i32, i32) {
    %c0_i32 = arith.constant 0 : i32
    %c0_i32_0 = arith.constant 0 : i32
    %c0_i32_1 = arith.constant 0 : i32
    return %arg0, %c0_i32, %c0_i32_0 : i32, i32, i32
  }
  func.func @transform_1(%arg0: i32) -> (i32, i32, i32) {
    %c0_i32 = arith.constant 0 : i32
    %c0_i32_0 = arith.constant 0 : i32
    %c0_i32_1 = arith.constant 0 : i32
    return %arg0, %c0_i32, %c0_i32_0 : i32, i32, i32
  }
  func.func @transform_2(%arg0: i32) -> (i32, i32, i32) {
    %c0_i32 = arith.constant 0 : i32
    %c0_i32_0 = arith.constant 0 : i32
    %c0_i32_1 = arith.constant 0 : i32
    %c0_i32_2 = arith.constant 0 : i32
    return %c0_i32, %c0_i32_0, %c0_i32_1 : i32, i32, i32
  }
  func.func @transform_3(%arg0: i32) -> (i32, i32, i32) {
    %c0_i32 = arith.constant 0 : i32
    %c0_i32_0 = arith.constant 0 : i32
    %c0_i32_1 = arith.constant 0 : i32
    %c0_i32_2 = arith.constant 0 : i32
    return %c0_i32, %c0_i32_0, %c0_i32_1 : i32, i32, i32
  }
  func.func @transform_4(%arg0: i32) -> (i32, i32, i32) {
    %c0_i32 = arith.constant 0 : i32
    %c0_i32_0 = arith.constant 0 : i32
    %c0_i32_1 = arith.constant 0 : i32
    %c0_i32_2 = arith.constant 0 : i32
    return %c0_i32, %c0_i32_0, %c0_i32_1 : i32, i32, i32
  }
  func.func @transform_5(%arg0: i32) -> (i32, i32, i32) {
    %c0_i32 = arith.constant 0 : i32
    %c0_i32_0 = arith.constant 0 : i32
    %c0_i32_1 = arith.constant 0 : i32
    %c0_i32_2 = arith.constant 0 : i32
    return %c0_i32, %c0_i32_0, %c0_i32_1 : i32, i32, i32
  }
  func.func @transform_6(%arg0: i32) -> (i32, i32, i32) {
    %c0_i32 = arith.constant 0 : i32
    %c0_i32_0 = arith.constant 0 : i32
    %c0_i32_1 = arith.constant 0 : i32
    return %arg0, %c0_i32, %c0_i32_0 : i32, i32, i32
  }
}

</mosaic_0001>

<llo_original>
// kernel: tpu_custom_call.1
$region0: #{tpu_custom_call.1}
  #allocation0 [shape = 'u32[]', space=smem, size = 0x4, offset = 0x4, fixed_abs, tag = 'smem constant byte address 0x4 - core index']
  #allocation1 [shape = 'u32[144,128]{1,0:T(1,128)}', space=vmem, size = 0x12000, scoped, tag = 'internal scratch']
  %s0 = inlined_call_operand.vmem [shape: f32[2,32,256], index: 0, kind: input, shape index: {}]
  %s1 = inlined_call_operand.hbm [shape: f32[2,32,256], index: 1, kind: input, shape index: {}]
  %s2 = inlined_call_operand.vmem [shape: f32[2,32,4], index: 2, kind: input, shape index: {}]
  %s3 = inlined_call_operand.vmem [shape: f32[2,1,4], index: 3, kind: input, shape index: {}]
  %s4 = inlined_call_operand.vmem [shape: f32[2,32,4], index: 4, kind: input, shape index: {}]
  %s5 = inlined_call_operand.vmem [shape: f32[2,32,1], index: 5, kind: input, shape index: {}]
  %s6 = inlined_call_operand.hbm [shape: f32[2,32,256], index: 6, kind: output, shape index: {}]
  %s7 = sld [smem:[#allocation0]]
  $region61: #{tpu_custom_call.1} parent=0
    _
  %s9 = ssub.s32 1, %s7
  %s10 = scalar_select 0, %s9, %s7
  $region1: #{tpu_custom_call.1} parent=0
    #allocation2 [shape = 'u8[65536]{0}', space=vmem, size = 0x10000, scoped, tag = 'input window, operand 1']
    #allocation3 [shape = 's32[2]{0}', space=sflag, size = 0x8, scoped, tag = 'scoped memory for tpu_custom_call.1']
    #allocation4 [shape = 's32[2]{0}', space=sflag, size = 0x8, scoped, tag = 'scoped memory for tpu_custom_call.1']
    #allocation5 [shape = 'u8[65536]{0}', space=vmem, size = 0x10000, scoped, tag = 'output window, operand 0']
    %11 = vsyncpa [#allocation3], 0
    %s12 = scalar_lea.sflag [#allocation3], 1
    %13 = vsyncpa %s12, 0
    %14 = vsyncpa [#allocation4], 0
    %s15 = scalar_lea.sflag [#allocation4], 1
    %16 = vsyncpa %s15, 0
    loop: start=0, step=1, limit=4
    $region2: #{tpu_custom_call.1} parent=1 // loop_pre_header
      _
    $region3: #{tpu_custom_call.1} parent=1 // loop_header
      %s18 = sphi 0, %s22
      %p19 = scmp.ge.s32.totalorder %s18, 4
      %s28 = sphi 0, %s30
      %s31 = sphi 0, %s28
      %s32 = sphi 0, %s31
      %s48 = sphi 0, %s32
      %s54 = sphi 0, %s56
      %s57 = sphi 0, %s54
      %s58 = sphi 0, %s57
      %s74 = sphi 0, %s58
      %s78 = sphi 0, %s78
      %s80 = sphi 0, %s78
      %s81 = sphi 0, %s80
      %s95 = sphi 0, %s81
      %s99 = sphi 0, %s99
      %s101 = sphi 0, %s99
      %s102 = sphi 0, %s101
      %s116 = sphi 0, %s102
      %s120 = sphi 0, %s120
      %s122 = sphi 0, %s120
      %s123 = sphi 0, %s122
      %s137 = sphi 0, %s123
      %s141 = sphi 0, %s141
      %s143 = sphi 0, %s141
      %s144 = sphi 0, %s143
      %s158 = sphi 0, %s144
      %s164 = sphi 0, %s166
      %s167 = sphi 0, %s164
      %s168 = sphi 0, %s167
      %s184 = sphi 0, %s168
    $region4: #{tpu_custom_call.1} parent=1 // loop_header_branch
      %21 = sbr.rel (%p19) target = $region8
    $region5: #{tpu_custom_call.1} parent=1 // loop_body
      %s23 = ssub.s32 %s18, 1
      %s24 = ssub.s32 %s18, 2
      %s25 = sadd.s32 %s18, 1
      %s26 = ssub.s32 %s18, %s25
      %p27 = scmp.eq.s32.totalorder %s26, 0
      %s29 = sadd.s32 %s28, 1
      %s30 = scalar_select %p27, %s28, %s29
      %p33 = pneg %p27
      %p34 = scmp.eq.s32.totalorder %s18, 1
      %p35 = por %p33, %p34
      %p36 = scmp.ne.s32.totalorder %s28, %s31
      %p37 = scmp.eq.s32.totalorder %s18, 0
      %p38 = por %p36, %p37
      %p39 = scmp.ne.s32.totalorder %s28, %s31
      %p40 = scmp.eq.s32.totalorder %s23, 1
      %p41 = por %p39, %p40
      %p42 = scmp.ne.s32.totalorder %s31, %s32
      %p43 = scmp.eq.s32.totalorder %s23, 0
      %p44 = por %p42, %p43
      %p45 = scmp.ne.s32.totalorder %s31, %s32
      %p46 = scmp.eq.s32.totalorder %s24, 1
      %p47 = por %p45, %p46
      %p49 = scmp.ne.s32.totalorder %s32, %s48
      %p50 = scmp.eq.s32.totalorder %s24, 0
      %p51 = por %p49, %p50
      %s52 = ssub.s32 %s18, %s25
      %p53 = scmp.eq.s32.totalorder %s52, 0
      %s55 = sadd.s32 %s54, 1
      %s56 = scalar_select %p53, %s54, %s55
      %p59 = pneg %p53
      %p60 = scmp.eq.s32.totalorder %s18, 1
      %p61 = por %p59, %p60
      %p62 = scmp.ne.s32.totalorder %s54, %s57
      %p63 = scmp.eq.s32.totalorder %s18, 0
      %p64 = por %p62, %p63
      %p65 = scmp.ne.s32.totalorder %s54, %s57
      %p66 = scmp.eq.s32.totalorder %s23, 1
      %p67 = por %p65, %p66
      %p68 = scmp.ne.s32.totalorder %s57, %s58
      %p69 = scmp.eq.s32.totalorder %s23, 0
      %p70 = por %p68, %p69
      %p71 = scmp.ne.s32.totalorder %s57, %s58
      %p72 = scmp.eq.s32.totalorder %s24, 1
      %p73 = por %p71, %p72
      %p75 = scmp.ne.s32.totalorder %s58, %s74
      %p76 = scmp.eq.s32.totalorder %s24, 0
      %p77 = por %p75, %p76
      %s79 = sadd.s32 %s78, 1
      %p82 = scmp.eq.s32.totalorder %s18, 1
      %p83 = scmp.ne.s32.totalorder %s78, %s80
      %p84 = scmp.eq.s32.totalorder %s18, 0
      %p85 = por %p83, %p84
      %p86 = scmp.ne.s32.totalorder %s78, %s80
      %p87 = scmp.eq.s32.totalorder %s23, 1
      %p88 = por %p86, %p87
      %p89 = scmp.ne.s32.totalorder %s80, %s81
      %p90 = scmp.eq.s32.totalorder %s23, 0
      %p91 = por %p89, %p90
      %p92 = scmp.ne.s32.totalorder %s80, %s81
      %p93 = scmp.eq.s32.totalorder %s24, 1
      %p94 = por %p92, %p93
      %p96 = scmp.ne.s32.totalorder %s81, %s95
      %p97 = scmp.eq.s32.totalorder %s24, 0
      %p98 = por %p96, %p97
      %s100 = sadd.s32 %s99, 1
      %p103 = scmp.eq.s32.totalorder %s18, 1
      %p104 = scmp.ne.s32.totalorder %s99, %s101
      %p105 = scmp.eq.s32.totalorder %s18, 0
      %p106 = por %p104, %p105
      %p107 = scmp.ne.s32.totalorder %s99, %s101
      %p108 = scmp.eq.s32.totalorder %s23, 1
      %p109 = por %p107, %p108
      %p110 = scmp.ne.s32.totalorder %s101, %s102
      %p111 = scmp.eq.s32.totalorder %s23, 0
      %p112 = por %p110, %p111
      %p113 = scmp.ne.s32.totalorder %s101, %s102
      %p114 = scmp.eq.s32.totalorder %s24, 1
      %p115 = por %p113, %p114
      %p117 = scmp.ne.s32.totalorder %s102, %s116
      %p118 = scmp.eq.s32.totalorder %s24, 0
      %p119 = por %p117, %p118
      %s121 = sadd.s32 %s120, 1
      %p124 = scmp.eq.s32.totalorder %s18, 1
      %p125 = scmp.ne.s32.totalorder %s120, %s122
      %p126 = scmp.eq.s32.totalorder %s18, 0
      %p127 = por %p125, %p126
      %p128 = scmp.ne.s32.totalorder %s120, %s122
      %p129 = scmp.eq.s32.totalorder %s23, 1
      %p130 = por %p128, %p129
      %p131 = scmp.ne.s32.totalorder %s122, %s123
      %p132 = scmp.eq.s32.totalorder %s23, 0
      %p133 = por %p131, %p132
      %p134 = scmp.ne.s32.totalorder %s122, %s123
      %p135 = scmp.eq.s32.totalorder %s24, 1
      %p136 = por %p134, %p135
      %p138 = scmp.ne.s32.totalorder %s123, %s137
      %p139 = scmp.eq.s32.totalorder %s24, 0
      %p140 = por %p138, %p139
      %s142 = sadd.s32 %s141, 1
      %p145 = scmp.eq.s32.totalorder %s18, 1
      %p146 = scmp.ne.s32.totalorder %s141, %s143
      %p147 = scmp.eq.s32.totalorder %s18, 0
      %p148 = por %p146, %p147
      %p149 = scmp.ne.s32.totalorder %s141, %s143
      %p150 = scmp.eq.s32.totalorder %s23, 1
      %p151 = por %p149, %p150
      %p152 = scmp.ne.s32.totalorder %s143, %s144
      %p153 = scmp.eq.s32.totalorder %s23, 0
      %p154 = por %p152, %p153
      %p155 = scmp.ne.s32.totalorder %s143, %s144
      %p156 = scmp.eq.s32.totalorder %s24, 1
      %p157 = por %p155, %p156
      %p159 = scmp.ne.s32.totalorder %s144, %s158
      %p160 = scmp.eq.s32.totalorder %s24, 0
      %p161 = por %p159, %p160
      %s162 = ssub.s32 %s18, %s25
      %p163 = scmp.eq.s32.totalorder %s162, 0
      %s165 = sadd.s32 %s164, 1
      %s166 = scalar_select %p163, %s164, %s165
      %p169 = pneg %p163
      %p170 = scmp.eq.s32.totalorder %s18, 1
      %p171 = por %p169, %p170
      %p172 = scmp.ne.s32.totalorder %s164, %s167
      %p173 = scmp.eq.s32.totalorder %s18, 0
      %p174 = por %p172, %p173
      %p175 = scmp.ne.s32.totalorder %s164, %s167
      %p176 = scmp.eq.s32.totalorder %s23, 1
      %p177 = por %p175, %p176
      %p178 = scmp.ne.s32.totalorder %s167, %s168
      %p179 = scmp.eq.s32.totalorder %s23, 0
      %p180 = por %p178, %p179
      %p181 = scmp.ne.s32.totalorder %s167, %s168
      %p182 = scmp.eq.s32.totalorder %s24, 1
      %p183 = por %p181, %p182
      %p185 = scmp.ne.s32.totalorder %s168, %s184
      %p186 = scmp.eq.s32.totalorder %s24, 0
      %p187 = por %p185, %p186
      %p188 = scmp.le.s32.totalorder 1, %s18
      %p189 = scmp.lt.s32.totalorder %s18, 3
      %p190 = pnand %p188, %p189
      %p191 = pneg %p190
      // Predicated region
      $region9: #{tpu_custom_call.1} parent=5 // pred_check
        _
      $region10: #{tpu_custom_call.1} parent=5 // pred_check_branch
        %193 = sbr.rel (%p190) target = $region12
      $region11: #{tpu_custom_call.1} parent=5 // pred_region
        %s194 = ssub.s32 %s18, 1
        // Predicated region
        $region13: #{tpu_custom_call.1} parent=11 // pred_check
          %p195 = pneg %p91
        $region14: #{tpu_custom_call.1} parent=11 // pred_check_branch
          %197 = sbr.rel (%p195) target = $region16
        $region15: #{tpu_custom_call.1} parent=11 // pred_region
          _
        $region16: #{tpu_custom_call.1} parent=11 // pred_fallthru
          _
        // Predicated region
        $region17: #{tpu_custom_call.1} parent=11 // pred_check
          %p198 = pneg %p112
        $region18: #{tpu_custom_call.1} parent=11 // pred_check_branch
          %200 = sbr.rel (%p198) target = $region20
        $region19: #{tpu_custom_call.1} parent=11 // pred_region
          _
        $region20: #{tpu_custom_call.1} parent=11 // pred_fallthru
          _
        // Predicated region
        $region21: #{tpu_custom_call.1} parent=11 // pred_check
          %p201 = pneg %p133
        $region22: #{tpu_custom_call.1} parent=11 // pred_check_branch
          %203 = sbr.rel (%p201) target = $region24
        $region23: #{tpu_custom_call.1} parent=11 // pred_region
          _
        $region24: #{tpu_custom_call.1} parent=11 // pred_fallthru
          _
        // Predicated region
        $region25: #{tpu_custom_call.1} parent=11 // pred_check
          %p204 = pneg %p154
        $region26: #{tpu_custom_call.1} parent=11 // pred_check_branch
          %206 = sbr.rel (%p204) target = $region28
        $region27: #{tpu_custom_call.1} parent=11 // pred_region
          _
        $region28: #{tpu_custom_call.1} parent=11 // pred_fallthru
          _
      $region12: #{tpu_custom_call.1} parent=5 // pred_fallthru
        _
      %p207 = scmp.lt.s32.totalorder %s18, 2
      // Predicated region
      $region29: #{tpu_custom_call.1} parent=5 // pred_check
        %p208 = pneg %p207
      $region30: #{tpu_custom_call.1} parent=5 // pred_check_branch
        %210 = sbr.rel (%p208) target = $region32
      $region31: #{tpu_custom_call.1} parent=5 // pred_region
        // Predicated region
        $region33: #{tpu_custom_call.1} parent=31 // pred_check
          %p211 = pneg %p38
        $region34: #{tpu_custom_call.1} parent=31 // pred_check_branch
          %213 = sbr.rel (%p211) target = $region36
        $region35: #{tpu_custom_call.1} parent=31 // pred_region
          %p214 = scmp.lt.s32.totalorder %s18, 1
          %s215 = scalar_select %p214, %s18, 1
          %s216 = smul.addr %s215, 8
          %s217 = smul.addr %s216, 8
          %s218 = scalar_lea.vmem %s0, %s217
        $region36: #{tpu_custom_call.1} parent=31 // pred_fallthru
          _
        // Predicated region
        $region37: #{tpu_custom_call.1} parent=31 // pred_check
          %p219 = pneg %p64
        $region38: #{tpu_custom_call.1} parent=31 // pred_check_branch
          %221 = sbr.rel (%p219) target = $region40
        $region39: #{tpu_custom_call.1} parent=31 // pred_region
          %s222 = sand.u32 %s54, 1
          %s223 = scalar_lea.sflag [#allocation3], %s222
          %s224 = sand.u32 %s54, 1
          %s225 = smul.addr %s224, 64
          %s226 = scalar_lea.vmem [#allocation2], %s225
          %s228 = ssub.s32 1024, 1024
          %229 = vsyncadd %s223, %s228
          %s230 = smul.addr %s18, 8
          %s231 = smul.addr %s230, 128
          %s232 = scalar_lea.hbm %s1, %s231
          %s233 = sshll.u32 %s226, 4
          %s234 = int_to_ptr.vmem [resolvable:$true] %s233
          %239 = dma.hbm_to_vmem [thread:$0]  %s232, 1024, %s234, %s223, 256, 256, 16
        $region40: #{tpu_custom_call.1} parent=31 // pred_fallthru
          _
      $region32: #{tpu_custom_call.1} parent=5 // pred_fallthru
        _
      %p240 = scmp.le.s32.totalorder 1, %s18
      %p241 = scmp.lt.s32.totalorder %s18, 3
      %p242 = pnand %p240, %p241
      %p243 = pneg %p242
      // Predicated region
      $region41: #{tpu_custom_call.1} parent=5 // pred_check
        _
      $region42: #{tpu_custom_call.1} parent=5 // pred_check_branch
        %245 = sbr.rel (%p242) target = $region44
      $region43: #{tpu_custom_call.1} parent=5 // pred_region
        %s246 = ssub.s32 %s18, 1
        %s247 = sand.u32 %s57, 1
        %s248 = scalar_lea.sflag [#allocation3], %s247
        %s249 = sand.u32 %s57, 1
        %s250 = smul.addr %s249, 64
        %s251 = scalar_lea.vmem [#allocation2], %s250
        // Predicated region
        $region45: #{tpu_custom_call.1} parent=43 // pred_check
          %p252 = pneg %p70
        $region46: #{tpu_custom_call.1} parent=43 // pred_check_branch
          %254 = sbr.rel (%p252) target = $region48
        $region47: #{tpu_custom_call.1} parent=43 // pred_region
          %255 = dma.done %s248, 1024
        $region48: #{tpu_custom_call.1} parent=43 // pred_fallthru
          _
        %p256 = scmp.lt.s32.totalorder %s23, 1
        %s257 = scalar_select %p256, %s23, 1
        %s258 = smul.addr %s257, 8
        %s259 = smul.addr %s258, 8
        %s260 = scalar_lea.vmem %s0, %s259
        %p261 = pneg %p44
        %p262 = pneg %p41
        %s263 = sand.u32 %s57, 1
        %s264 = scalar_lea.sflag [#allocation3], %s263
        %s265 = sand.u32 %s57, 1
        %s266 = smul.addr %s265, 64
        %s267 = scalar_lea.vmem [#allocation2], %s266
        %p268 = pneg %p70
        %p269 = pneg %p67
        %p270 = pneg %p91
        %p271 = pneg %p88
        %p272 = pneg %p112
        %p273 = pneg %p109
        %p274 = pneg %p133
        %p275 = pneg %p130
        %p276 = pneg %p154
        %p277 = pneg %p151
        %p278 = pneg %p180
        %p279 = pneg %p177
        %s280 = sand.u32 %s167, 1
        %s281 = scalar_lea.sflag [#allocation4], %s280
        %s282 = sand.u32 %s167, 1
        %s283 = smul.addr %s282, 64
        %s284 = scalar_lea.vmem [#allocation5], %s283
        %p285 = scmp.lt.s32.totalorder %s23, 1
        %s286 = scalar_select %p285, %s23, 1
        %s287 = smul.addr %s286, 8
        %s288 = smul.addr %s287, 8
        %s289 = scalar_lea.vmem %s0, %s288
        %v290 = vld [vmem:[%s289] sm:$0xff]
        %v291 = vld [vmem:[%s289 + $0x8] sm:$0xff]
        %v292 = vld [vmem:[%s289 + $0x10] sm:$0xff]
        %v293 = vld [vmem:[%s289 + $0x18] sm:$0xff]
        %v294 = vld [vmem:[%s289 + $0x20] sm:$0xff]
        %v295 = vld [vmem:[%s289 + $0x28] sm:$0xff]
        %v296 = vld [vmem:[%s289 + $0x30] sm:$0xff]
        %v297 = vld [vmem:[%s289 + $0x38] sm:$0xff]
        %v298 = vld [vmem:[%s251] sm:$0xff]
        %v299 = vld [vmem:[%s251 + $0x8] sm:$0xff]
        %v300 = vld [vmem:[%s251 + $0x10] sm:$0xff]
        %v301 = vld [vmem:[%s251 + $0x18] sm:$0xff]
        %v302 = vld [vmem:[%s251 + $0x20] sm:$0xff]
        %v303 = vld [vmem:[%s251 + $0x28] sm:$0xff]
        %v304 = vld [vmem:[%s251 + $0x30] sm:$0xff]
        %v305 = vld [vmem:[%s251 + $0x38] sm:$0xff]
        %v306 = vadd.f32 %v290, %v291
        %307 = vadd.xlane.f32.xlu0 %v306
        %v308 = vpop.xlane.xlu0 %307
        %v309 = vadd.f32 %v292, %v293
        %310 = vadd.xlane.f32.xlu0 %v309
        %v311 = vpop.xlane.xlu0 %310
        %v312 = vadd.f32 %v294, %v295
        %313 = vadd.xlane.f32.xlu0 %v312
        %v314 = vpop.xlane.xlu0 %313
        %v315 = vadd.f32 %v296, %v297
        %316 = vadd.xlane.f32.xlu0 %v315
        %v317 = vpop.xlane.xlu0 %316
        %v318 = vmul.f32 %v308, 0.00390625
        %v319 = vmul.f32 %v311, 0.00390625
        %v320 = vmul.f32 %v314, 0.00390625
        %v321 = vmul.f32 %v317, 0.00390625
        %v322 = vadd.f32 %v298, %v299
        %323 = vadd.xlane.f32.xlu0 %v322
        %v324 = vpop.xlane.xlu0 %323
        %v325 = vadd.f32 %v300, %v301
        %326 = vadd.xlane.f32.xlu0 %v325
        %v327 = vpop.xlane.xlu0 %326
        %v328 = vadd.f32 %v302, %v303
        %329 = vadd.xlane.f32.xlu0 %v328
        %v330 = vpop.xlane.xlu0 %329
        %v331 = vadd.f32 %v304, %v305
        %332 = vadd.xlane.f32.xlu0 %v331
        %v333 = vpop.xlane.xlu0 %332
        %v334 = vmul.f32 %v324, 0.00390625
        %v335 = vmul.f32 %v327, 0.00390625
        %v336 = vmul.f32 %v330, 0.00390625
        %v337 = vmul.f32 %v333, 0.00390625
        %v338 = vld [vmem:[%s2] sm:$0xff]
        %v339 = vld [vmem:[%s2 + $0x8] sm:$0xff]
        %v340 = vld [vmem:[%s2 + $0x10] sm:$0xff]
        %v341 = vld [vmem:[%s2 + $0x18] sm:$0xff]
        %v342 = vld [vmem:[%s3] sm:$0x1]
        %v343 = vld [vmem:[%s4] sm:$0xff]
        %v344 = vld [vmem:[%s4 + $0x8] sm:$0xff]
        %v345 = vld [vmem:[%s4 + $0x10] sm:$0xff]
        %v346 = vld [vmem:[%s4 + $0x18] sm:$0xff]
        %v347 = vld [vmem:[%s5] sm:$0xff]
        %v348 = vld [vmem:[%s5 + $0x8] sm:$0xff]
        %v349 = vld [vmem:[%s5 + $0x10] sm:$0xff]
        %v350 = vld [vmem:[%s5 + $0x18] sm:$0xff]
        %v351 = vmul.f32 %v338, %v318
        %v352 = vmul.f32 %v339, %v319
        %v353 = vmul.f32 %v340, %v320
        %v354 = vmul.f32 %v341, %v321
        %vm355 = vcmask 31744
        %v356 = vsel %vm355, %v351, 0.0
        %v357 = vsel %vm355, %v352, 0.0
        %v358 = vadd.f32 %v356, %v357
        %v359 = vsel %vm355, %v353, 0.0
        %v360 = vadd.f32 %v358, %v359
        %v361 = vsel %vm355, %v354, 0.0
        %v362 = vadd.f32 %v360, %v361
        %v363 = vrot.slane %v362, 4
        %v364 = vadd.f32 %v362, %v363
        %v365 = vrot.slane %v364, 2
        %v366 = vadd.f32 %v364, %v365
        %v367 = vrot.slane %v366, 1
        %v368 = vadd.f32 %v366, %v367
        %v369 = vadd.f32 %v368, %v342
        %v370 = vmax.f32 %v369, 0.0
        %v371 = vlaneseq
        %v372 = vshrl.u32 %v371, 7
        %v373 = vsub.s32 0, %v372
        %v374 = vrot.slane %v370, %v373
        %v375 = vmul.f32 %v343, %v374
        %v376 = vmul.f32 %v344, %v374
        %v377 = vmul.f32 %v345, %v374
        %v378 = vmul.f32 %v346, %v374
        %v379 = vsel %vm355, %v375, 0.0
        %380 = vadd.xlane.f32.xlu0 %v379
        %v381 = vpop.xlane.xlu0 %380
        %v382 = vsel %vm355, %v376, 0.0
        %383 = vadd.xlane.f32.xlu0 %v382
        %v384 = vpop.xlane.xlu0 %383
        %v385 = vsel %vm355, %v377, 0.0
        %386 = vadd.xlane.f32.xlu0 %v385
        %v387 = vpop.xlane.xlu0 %386
        %v388 = vsel %vm355, %v378, 0.0
        %389 = vadd.xlane.f32.xlu0 %v388
        %v390 = vpop.xlane.xlu0 %389
        %v391 = vadd.f32 %v381, %v347
        %v392 = vadd.f32 %v384, %v348
        %v393 = vadd.f32 %v387, %v349
        %v394 = vadd.f32 %v390, %v350
        %v395 = vsub.f32 0.0, %v391
        %v396 = vsub.f32 0.0, %v392
        %v397 = vsub.f32 0.0, %v393
        %v398 = vsub.f32 0.0, %v394
        %v399 = vmul.f32 %v395, 1.442695
        %v400 = vpow.pop %v399
        %v401 = vmul.f32 %v396, 1.442695
        %v402 = vpow.pop %v401
        %v403 = vmul.f32 %v397, 1.442695
        %v404 = vpow.pop %v403
        %v405 = vmul.f32 %v398, 1.442695
        %v406 = vpow.pop %v405
        %v407 = vadd.f32 %v400, 1.0
        %v408 = vadd.f32 %v402, 1.0
        %v409 = vadd.f32 %v404, 1.0
        %v410 = vadd.f32 %v406, 1.0
        %v411 = vrcp.pop %v407
        %v412 = vmul.f32 1.0, %v411
        %v413 = vrcp.pop %v408
        %v414 = vmul.f32 1.0, %v413
        %v415 = vrcp.pop %v409
        %v416 = vmul.f32 1.0, %v415
        %v417 = vrcp.pop %v410
        %v418 = vmul.f32 1.0, %v417
        %s419 = scalar_lea.vmem %s2, 32
        %v420 = vld [vmem:[%s419] sm:$0xff]
        %v421 = vld [vmem:[%s419 + $0x8] sm:$0xff]
        %v422 = vld [vmem:[%s419 + $0x10] sm:$0xff]
        %v423 = vld [vmem:[%s419 + $0x18] sm:$0xff]
        %s424 = scalar_lea.vmem %s3, 1
        %v425 = vld [vmem:[%s424] sm:$0x1]
        %s426 = scalar_lea.vmem %s4, 32
        %v427 = vld [vmem:[%s426] sm:$0xff]
        %v428 = vld [vmem:[%s426 + $0x8] sm:$0xff]
        %v429 = vld [vmem:[%s426 + $0x10] sm:$0xff]
        %v430 = vld [vmem:[%s426 + $0x18] sm:$0xff]
        %s431 = scalar_lea.vmem %s5, 32
        %v432 = vld [vmem:[%s431] sm:$0xff]
        %v433 = vld [vmem:[%s431 + $0x8] sm:$0xff]
        %v434 = vld [vmem:[%s431 + $0x10] sm:$0xff]
        %v435 = vld [vmem:[%s431 + $0x18] sm:$0xff]
        %v436 = vmul.f32 %v420, %v334
        %v437 = vmul.f32 %v421, %v335
        %v438 = vmul.f32 %v422, %v336
        %v439 = vmul.f32 %v423, %v337
        %v440 = vsel %vm355, %v436, 0.0
        %v441 = vsel %vm355, %v437, 0.0
        %v442 = vadd.f32 %v440, %v441
        %v443 = vsel %vm355, %v438, 0.0
        %v444 = vadd.f32 %v442, %v443
        %v445 = vsel %vm355, %v439, 0.0
        %v446 = vadd.f32 %v444, %v445
        %v447 = vrot.slane %v446, 4
        %v448 = vadd.f32 %v446, %v447
        %v449 = vrot.slane %v448, 2
        %v450 = vadd.f32 %v448, %v449
        %v451 = vrot.slane %v450, 1
        %v452 = vadd.f32 %v450, %v451
        %v453 = vadd.f32 %v452, %v425
        %v454 = vmax.f32 %v453, 0.0
        %v455 = vlaneseq
        %v456 = vshrl.u32 %v455, 7
        %v457 = vsub.s32 0, %v456
        %v458 = vrot.slane %v454, %v457
        %v459 = vmul.f32 %v427, %v458
        %v460 = vmul.f32 %v428, %v458
        %v461 = vmul.f32 %v429, %v458
        %v462 = vmul.f32 %v430, %v458
        %v463 = vsel %vm355, %v459, 0.0
        %464 = vadd.xlane.f32.xlu0 %v463
        %v465 = vpop.xlane.xlu0 %464
        %v466 = vsel %vm355, %v460, 0.0
        %467 = vadd.xlane.f32.xlu0 %v466
        %v468 = vpop.xlane.xlu0 %467
        %v469 = vsel %vm355, %v461, 0.0
        %470 = vadd.xlane.f32.xlu0 %v469
        %v471 = vpop.xlane.xlu0 %470
        %v472 = vsel %vm355, %v462, 0.0
        %473 = vadd.xlane.f32.xlu0 %v472
        %v474 = vpop.xlane.xlu0 %473
        %v475 = vadd.f32 %v465, %v432
        %v476 = vadd.f32 %v468, %v433
        %v477 = vadd.f32 %v471, %v434
        %v478 = vadd.f32 %v474, %v435
        %v479 = vsub.f32 0.0, %v475
        %v480 = vsub.f32 0.0, %v476
        %v481 = vsub.f32 0.0, %v477
        %v482 = vsub.f32 0.0, %v478
        %v483 = vmul.f32 %v479, 1.442695
        %v484 = vpow.pop %v483
        %v485 = vmul.f32 %v480, 1.442695
        %v486 = vpow.pop %v485
        %v487 = vmul.f32 %v481, 1.442695
        %v488 = vpow.pop %v487
        %v489 = vmul.f32 %v482, 1.442695
        %v490 = vpow.pop %v489
        %v491 = vadd.f32 %v484, 1.0
        %v492 = vadd.f32 %v486, 1.0
        %v493 = vadd.f32 %v488, 1.0
        %v494 = vadd.f32 %v490, 1.0
        %v495 = vrcp.pop %v491
        %v496 = vmul.f32 1.0, %v495
        %v497 = vrcp.pop %v492
        %v498 = vmul.f32 1.0, %v497
        %v499 = vrcp.pop %v493
        %v500 = vmul.f32 1.0, %v499
        %v501 = vrcp.pop %v494
        %v502 = vmul.f32 1.0, %v501
        %504 = vset.pattern.permute.xlu0 0
        %505 = vperm.xlu0 %504, %v412
        %v506 = vpop.permute.xlu0 %505
        %509 = vset.pattern.permute.xlu0 0
        %510 = vperm.xlu0 %509, %v414
        %v511 = vpop.permute.xlu0 %510
        %514 = vset.pattern.permute.xlu0 0
        %515 = vperm.xlu0 %514, %v416
        %v516 = vpop.permute.xlu0 %515
        %519 = vset.pattern.permute.xlu0 0
        %520 = vperm.xlu0 %519, %v418
        %v521 = vpop.permute.xlu0 %520
        %v523 = vmul.f32 %v290, %v506
        %v524 = vmul.f32 %v291, %v506
        %v525 = vmul.f32 %v292, %v511
        %v526 = vmul.f32 %v293, %v511
        %v527 = vmul.f32 %v294, %v516
        %v528 = vmul.f32 %v295, %v516
        %v529 = vmul.f32 %v296, %v521
        %v530 = vmul.f32 %v297, %v521
        %532 = vset.pattern.permute.xlu0 0
        %533 = vperm.xlu0 %532, %v496
        %v534 = vpop.permute.xlu0 %533
        %537 = vset.pattern.permute.xlu0 0
        %538 = vperm.xlu0 %537, %v498
        %v539 = vpop.permute.xlu0 %538
        %542 = vset.pattern.permute.xlu0 0
        %543 = vperm.xlu0 %542, %v500
        %v544 = vpop.permute.xlu0 %543
        %547 = vset.pattern.permute.xlu0 0
        %548 = vperm.xlu0 %547, %v502
        %v549 = vpop.permute.xlu0 %548
        %v551 = vmul.f32 %v298, %v534
        %v552 = vmul.f32 %v299, %v534
        %v553 = vmul.f32 %v300, %v539
        %v554 = vmul.f32 %v301, %v539
        %v555 = vmul.f32 %v302, %v544
        %v556 = vmul.f32 %v303, %v544
        %v557 = vmul.f32 %v304, %v549
        %v558 = vmul.f32 %v305, %v549
        %v559 = vadd.f32 %v523, %v551
        %v560 = vadd.f32 %v524, %v552
        %v561 = vadd.f32 %v525, %v553
        %v562 = vadd.f32 %v526, %v554
        %v563 = vadd.f32 %v527, %v555
        %v564 = vadd.f32 %v528, %v556
        %v565 = vadd.f32 %v529, %v557
        %v566 = vadd.f32 %v530, %v558
        %567 = vst [vmem:[%s284] sm:$0xff] %v559
        %568 = vst [vmem:[%s284 + $0x8] sm:$0xff] %v560
        %569 = vst [vmem:[%s284 + $0x10] sm:$0xff] %v561
        %570 = vst [vmem:[%s284 + $0x18] sm:$0xff] %v562
        %571 = vst [vmem:[%s284 + $0x20] sm:$0xff] %v563
        %572 = vst [vmem:[%s284 + $0x28] sm:$0xff] %v564
        %573 = vst [vmem:[%s284 + $0x30] sm:$0xff] %v565
        %574 = vst [vmem:[%s284 + $0x38] sm:$0xff] %v566
        %s575 = sand.u32 %s167, 1
        %s576 = scalar_lea.sflag [#allocation4], %s575
        %s577 = sand.u32 %s167, 1
        %s578 = smul.addr %s577, 64
        %s579 = scalar_lea.vmem [#allocation5], %s578
        // Predicated region
        $region49: #{tpu_custom_call.1} parent=43 // pred_check
          %p580 = pneg %p177
        $region50: #{tpu_custom_call.1} parent=43 // pred_check_branch
          %582 = sbr.rel (%p580) target = $region52
        $region51: #{tpu_custom_call.1} parent=43 // pred_region
          %s584 = ssub.s32 1024, 1024
          %585 = vsyncadd %s576, %s584
          %s586 = smul.addr %s23, 8
          %s587 = smul.addr %s586, 128
          %s588 = scalar_lea.hbm %s6, %s587
          %s589 = sshll.u32 %s579, 4
          %s590 = int_to_ptr.vmem [resolvable:$true] %s589
          %595 = dma.vmem_to_hbm [thread:$0]  %s590, 1024, %s588, %s576, 256, 256, 16
        $region52: #{tpu_custom_call.1} parent=43 // pred_fallthru
          _
      $region44: #{tpu_custom_call.1} parent=5 // pred_fallthru
        _
      %p596 = scmp.le.s32.totalorder 2, %s18
      // Predicated region
      $region53: #{tpu_custom_call.1} parent=5 // pred_check
        %p597 = pneg %p596
      $region54: #{tpu_custom_call.1} parent=5 // pred_check_branch
        %599 = sbr.rel (%p597) target = $region56
      $region55: #{tpu_custom_call.1} parent=5 // pred_region
        %s600 = ssub.s32 %s18, 2
        // Predicated region
        $region57: #{tpu_custom_call.1} parent=55 // pred_check
          %p601 = pneg %p183
        $region58: #{tpu_custom_call.1} parent=55 // pred_check_branch
          %603 = sbr.rel (%p601) target = $region60
        $region59: #{tpu_custom_call.1} parent=55 // pred_region
          %s604 = sand.u32 %s168, 1
          %s605 = scalar_lea.sflag [#allocation4], %s604
          %s606 = sand.u32 %s168, 1
          %s607 = smul.addr %s606, 64
          %s608 = scalar_lea.vmem [#allocation5], %s607
          %609 = dma.done %s605, 1024
        $region60: #{tpu_custom_call.1} parent=55 // pred_fallthru
          _
      $region56: #{tpu_custom_call.1} parent=5 // pred_fallthru
        _
    $region6: #{tpu_custom_call.1} parent=1 // loop_footer
      %s22 = sadd.s32 1, %s18
    $region7: #{tpu_custom_call.1} parent=1 // loop_footer_branch
      %17 = sbr.rel target = $region3
    $region8: #{tpu_custom_call.1} parent=1 // loop_exit
      _
    %610 = vsyncpa [#allocation3], 1
    %s611 = scalar_lea.sflag [#allocation3], 1
    %612 = vsyncpa %s611, 1
    %613 = vsyncpa [#allocation4], 1
    %s614 = scalar_lea.sflag [#allocation4], 1
    %615 = vsyncpa %s614, 1

</llo_original>
